<compile_context>
chip_gen: v6e
topology: v6e:2x2x1
jax: 0.10.0
libtpu: 0.0.40
codegen_flags: <defaults>
</compile_context>

<pallas_src>
import jax
import jax.numpy as jnp
from jax import lax
from jax.experimental import pallas as pl
from jax.experimental.pallas import tpu as pltpu

_LANES = 128
_INNER_ROWS = 512     # rows per in-kernel streaming chunk (f32 temps ~256 KiB each)


def _auto_config(dtype_bytes):
    """(block_rows, n_splits) tuned per TPU generation."""
    kind = ""
    try:
        kind = jax.devices()[0].device_kind.lower()
    except Exception:
        pass
    if "v7" in kind:
        # 2 TensorCores @ ~3.2 TB/s each: ~4 MiB per input per step, 2-way split.
        target_bytes, n_splits = 4 << 20, 2
    else:
        # v5e / v6e: single TensorCore, ~2 MiB per input per step.
        target_bytes, n_splits = 2 << 20, 1
    block_rows = max(1024, target_bytes // (_LANES * dtype_bytes))
    return int(block_rows), n_splits


def _make_ssq_kernel(*, block_rows, inner, bps, nb_full, rows):
    """Kernel factory; all tiling parameters are static Python ints."""
    n_inner = block_rows // inner

    def kernel(yhat_ref, y_ref, out_ref):
        c = pl.program_id(0)            # split (parallel axis; 2 TCs on v7x)
        i = pl.program_id(1)            # reduction step within the split

        @pl.when(i == 0)
        def _():
            out_ref[...] = jnp.zeros_like(out_ref)

        vb = c * bps + i                # virtual (unclamped) row-block index

        def block_ssq(masked):
            # Stream the (block_rows, 128) tile in `inner`-row chunks so the f32
            # intermediates stay small no matter how big the DMA tile is.
            def body(k, acc):
                r0 = pl.multiple_of(k * inner, inner)
                a = yhat_ref[pl.ds(r0, inner), :].astype(jnp.float32)
                b = y_ref[pl.ds(r0, inner), :].astype(jnp.float32)
                d = a - b
                dd = d * d
                if masked:
                    row = (vb * block_rows + r0
                           + lax.broadcasted_iota(jnp.int32, (inner, _LANES), 0))
                    dd = jnp.where(row < rows, dd, 0.0)
                # (inner,128) -> (inner//8, 8, 128): groups of whole (8,128)
                # tiles, so the axis-0 sum is pure VALU adds (no XLU work).
                return acc + jnp.sum(dd.reshape(-1, 8, _LANES), axis=0)

            return lax.fori_loop(0, n_inner, body,
                                 jnp.zeros((8, _LANES), jnp.float32))

        # Hot path: fully-valid blocks, no masking cost.
        @pl.when(vb < nb_full)
        def _():
            out_ref[...] += block_ssq(masked=False)

        # Cold path (at most once per split): partial / over-covered block.
        @pl.when(vb >= nb_full)
        def _():
            out_ref[...] += block_ssq(masked=True)

    return kernel


def rms_loss(yhat, y, *, block_rows=None, n_splits=None, inner_rows=_INNER_ROWS):
    """sqrt(mean((yhat - y)**2)) -- matches torch.sqrt(nn.MSELoss()(yhat, y))."""
    assert yhat.shape == y.shape, "MSELoss broadcast mismatch not supported"
    n = yhat.size
    yhat_f = jnp.ravel(yhat)
    y_f = jnp.ravel(y)

    dtype_bytes = max(jnp.dtype(yhat.dtype).itemsize, jnp.dtype(y.dtype).itemsize)
    auto_rows, auto_splits = _auto_config(dtype_bytes)
    if block_rows is None:
        block_rows = auto_rows
    if n_splits is None:
        n_splits = auto_splits

    # Sanitize tiling: multiples of 8, and inner must divide block_rows.
    block_rows = max(8, (int(block_rows) // 8) * 8)
    inner = max(8, min((int(inner_rows) // 8) * 8, block_rows))
    block_rows = (block_rows // inner) * inner

    rows = n // _LANES                  # full 128-wide rows
    rem = n - rows * _LANES             # < 128 leftover elements

    if rows < block_rows:
        # Small inputs: a fused XLA reduction beats a Pallas launch here.
        d = yhat_f.astype(jnp.float32) - y_f.astype(jnp.float32)
        return jnp.sqrt(jnp.sum(d * d) / jnp.float32(n))

    if rem:
        # TODO(synk): n % 128 != 0 still materializes a near-full slice copy;
        # removable with allow_input_fusion on the two tensor operands.
        yhat_main = yhat_f[: rows * _LANES].reshape(rows, _LANES)
        y_main = y_f[: rows * _LANES].reshape(rows, _LANES)
    else:
        yhat_main = yhat_f.reshape(rows, _LANES)   # pure bitcast, no copy
        y_main = y_f.reshape(rows, _LANES)

    nb = -(-rows // block_rows)         # row blocks (last one may be partial)
    nb_full = rows // block_rows        # fully-valid row blocks
    n_splits = max(1, min(n_splits, nb))
    bps = -(-nb // n_splits)            # row blocks per split (virtual coverage)

    def in_map(c, i):
        # Clamp over-covered virtual blocks onto the last real block; the kernel
        # masks their contribution to zero, so the fetched data is irrelevant.
        return (jnp.minimum(c * bps + i, nb - 1), 0)

    kernel = _make_ssq_kernel(block_rows=block_rows, inner=inner, bps=bps,
                              nb_full=nb_full, rows=rows)

    partials = pl.pallas_call(
        kernel,
        out_shape=jax.ShapeDtypeStruct((n_splits * 8, _LANES), jnp.float32),
        grid_spec=pltpu.PrefetchScalarGridSpec(
            num_scalar_prefetch=0,
            grid=(n_splits, bps),
            in_specs=[
                pl.BlockSpec((block_rows, _LANES), in_map),
                pl.BlockSpec((block_rows, _LANES), in_map),
            ],
            # One tiny (8,128) accumulator block per split, VMEM-resident across
            # the reduction axis; disjoint blocks across the parallel axis.
            out_specs=pl.BlockSpec((8, _LANES), lambda c, i: (c, 0)),
        ),
        compiler_params=pltpu.CompilerParams(
            # TODO(synk): on v7x, confirm in a profile that the leading axis is
            # sharded across both TensorCores (else switch to CORE_PARALLEL).
            dimension_semantics=("parallel", "arbitrary"),
        ),
    )(yhat_main, y_main)

    ssq = jnp.sum(partials)             # cross-lane reduce on <= 8 KiB

    if rem:
        d_tail = (yhat_f[rows * _LANES:].astype(jnp.float32)
                  - y_f[rows * _LANES:].astype(jnp.float32))
        ssq = ssq + jnp.sum(d_tail * d_tail)

    # NOTE: float32(n) rounds for n > 2^24 (<= 2^-24 relative error in the mean).
    return jnp.sqrt(ssq / jnp.float32(n))


if __name__ == "__main__":
    key = jax.random.PRNGKey(0)
    k1, k2, k3, k4, k5, k6, k7, k8 = jax.random.split(key, 8)

    def _ref(a, b):
        d = a.astype(jnp.float32) - b.astype(jnp.float32)
        return jnp.sqrt(jnp.mean(d * d))

    # 1) DeepDTA-sized (batch, 1) affinities -> small-N fast path (plain JAX),
    #    exercising the auto-config path (no overrides).
    yhat_s = jax.random.normal(k1, (8, 1), dtype=jnp.float32)
    y_s = jax.random.normal(k2, (8, 1), dtype=jnp.float32)
    out_s = jax.block_until_ready(rms_loss(yhat_s, y_s))
    assert jnp.allclose(out_s, _ref(yhat_s, y_s), atol=1e-5, rtol=1e-5), out_s

    # 2) Small-shape Pallas exercise: 2-way split, multi-step accumulation, and
    #    an in-kernel masked partial block (rows=50, block_rows=16).
    yhat_m = jax.random.normal(k3, (2, 4, 16, 50), dtype=jnp.float32)   # 6400 elems
    y_m = jax.random.normal(k4, (2, 4, 16, 50), dtype=jnp.float32)
    out_m = jax.block_until_ready(rms_loss(yhat_m, y_m, block_rows=16, n_splits=2))
    assert jnp.allclose(out_m, _ref(yhat_m, y_m), atol=1e-5, rtol=1e-5), out_m

    # 3) bf16 inputs, chunk-unaligned size handled fully in-kernel (no slice
    #    copy, no JAX tail): rows=2080, block_rows=256, inner=64, 2 splits with
    #    one clamped + fully-masked over-coverage block.
    yhat_l = jax.random.normal(k5, (1024, 260), dtype=jnp.bfloat16)
    y_l = jax.random.normal(k6, (1024, 260), dtype=jnp.bfloat16)
    out_l = jax.block_until_ready(
        rms_loss(yhat_l, y_l, block_rows=256, n_splits=2, inner_rows=64))
    ref_l = _ref(yhat_l, y_l)
    assert jnp.allclose(out_l, ref_l, atol=1e-3, rtol=1e-3), (out_l, ref_l)
    # Auto-config call on the same inputs (falls back to XLA when the tuned tile
    # exceeds the input): exercises the chip-detection path.
    out_auto = jax.block_until_ready(rms_loss(yhat_l, y_l))
    assert jnp.allclose(out_auto, ref_l, atol=1e-3, rtol=1e-3), (out_auto, ref_l)

    # 4) 128-unaligned total size: Pallas main part + tiny JAX tail (72 elems).
    yhat_u = jax.random.normal(k7, (40, 37), dtype=jnp.float32)         # 1480 elems
    y_u = jax.random.normal(k8, (40, 37), dtype=jnp.float32)
    out_u = jax.block_until_ready(rms_loss(yhat_u, y_u, block_rows=8, n_splits=1))
    assert jnp.allclose(out_u, _ref(yhat_u, y_u), atol=1e-5, rtol=1e-5), out_u

    print("KERNEL_OK")
</pallas_src>

<mosaic_0001>
module attributes {stable_mosaic.version = 11 : i64} {
  func.func @kernel(%arg0: i32, %arg1: i32, %arg2: memref<16x128xf32, #tpu.memory_space<vmem>>, %arg3: memref<16x128xf32, #tpu.memory_space<vmem>>, %arg4: memref<8x128xf32, #tpu.memory_space<vmem>>) attributes {dimension_semantics = [#tpu.dimension_semantics<parallel>, #tpu.dimension_semantics<arbitrary>], iteration_bounds = array<i64: 2, 2>, scalar_prefetch = 0 : i64, scratch_operands = 0 : i64, tpu.core_type = #tpu.core_type<tc>, window_params = [{transform_indices = @transform_0, window_bounds = array<i64: 16, 128>}, {transform_indices = @transform_1, window_bounds = array<i64: 16, 128>}, {transform_indices = @transform_2, window_bounds = array<i64: 8, 128>}]} {
    %c0_i32 = arith.constant 0 : i32
    %0 = arith.cmpi eq, %arg1, %c0_i32 : i32
    %1 = arith.extui %0 : i1 to i32
    %c0_i32_0 = arith.constant 0 : i32
    %2 = arith.cmpi ne, %1, %c0_i32_0 : i32
    scf.if %2 {
      %cst = arith.constant 0.000000e+00 : f32
      %11 = vector.broadcast %cst : f32 to vector<8x128xf32>
      %c0 = arith.constant 0 : index
      %c0_4 = arith.constant 0 : index
      %12 = vector.load %arg4[%c0, %c0_4] : memref<8x128xf32, #tpu.memory_space<vmem>>, vector<8x128xf32>
      tpu.vector_store %arg4[%c0, %c0_4], %11 {strides = array<i32>} : memref<8x128xf32, #tpu.memory_space<vmem>>, vector<8x128xf32>,
    } else {
    }
    %c2_i32 = arith.constant 2 : i32
    %3 = arith.muli %arg0, %c2_i32 : i32
    %4 = arith.addi %3, %arg1 : i32
    %c3_i32 = arith.constant 3 : i32
    %5 = arith.cmpi slt, %4, %c3_i32 : i32
    %6 = arith.extui %5 : i1 to i32
    %c0_i32_1 = arith.constant 0 : i32
    %7 = arith.cmpi ne, %6, %c0_i32_1 : i32
    scf.if %7 {
      %c0 = arith.constant 0 : index
      %c0_4 = arith.constant 0 : index
      %11 = vector.load %arg4[%c0, %c0_4] : memref<8x128xf32, #tpu.memory_space<vmem>>, vector<8x128xf32>
      %cst = arith.constant 0.000000e+00 : f32
      %12 = vector.broadcast %cst : f32 to vector<8x128xf32>
      %c0_i32_5 = arith.constant 0 : i32
      %c16_i32 = arith.constant 16 : i32
      %13 = arith.muli %c0_i32_5, %c16_i32 : i32
      %14 = tpu.assume_multiple %13, 16 : i32
      %15 = arith.index_cast %14 : i32 to index
      %c0_6 = arith.constant 0 : index
      %16 = vector.load %arg2[%15, %c0_6] : memref<16x128xf32, #tpu.memory_space<vmem>>, vector<16x128xf32>
      %17 = arith.index_cast %14 : i32 to index
      %c0_7 = arith.constant 0 : index
      %18 = vector.load %arg3[%17, %c0_7] : memref<16x128xf32, #tpu.memory_space<vmem>>, vector<16x128xf32>
      %19 = arith.subf %16, %18 : vector<16x128xf32>
      %20 = arith.mulf %19, %19 : vector<16x128xf32>
      %21 = vector.shape_cast %20 : vector<16x128xf32> to vector<2x8x128xf32>
      %cst_8 = arith.constant dense<0.000000e+00> : vector<8x128xf32>
      %22 = vector.multi_reduction <add>, %21, %cst_8 [0] : vector<2x8x128xf32> to vector<8x128xf32>
      %23 = arith.addf %12, %22 : vector<8x128xf32>
      %c1_i32 = arith.constant 1 : i32
      %24 = arith.addf %11, %23 : vector<8x128xf32>
      %c0_9 = arith.constant 0 : index
      %c0_10 = arith.constant 0 : index
      %25 = vector.load %arg4[%c0_9, %c0_10] : memref<8x128xf32, #tpu.memory_space<vmem>>, vector<8x128xf32>
      tpu.vector_store %arg4[%c0_9, %c0_10], %24 {strides = array<i32>} : memref<8x128xf32, #tpu.memory_space<vmem>>, vector<8x128xf32>,
    } else {
    }
    %c3_i32_2 = arith.constant 3 : i32
    %8 = arith.cmpi sge, %4, %c3_i32_2 : i32
    %9 = arith.extui %8 : i1 to i32
    %c0_i32_3 = arith.constant 0 : i32
    %10 = arith.cmpi ne, %9, %c0_i32_3 : i32
    scf.if %10 {
      %c0 = arith.constant 0 : index
      %c0_4 = arith.constant 0 : index
      %11 = vector.load %arg4[%c0, %c0_4] : memref<8x128xf32, #tpu.memory_space<vmem>>, vector<8x128xf32>
      %cst = arith.constant 0.000000e+00 : f32
      %12 = vector.broadcast %cst : f32 to vector<8x128xf32>
      %c0_i32_5 = arith.constant 0 : i32
      %c16_i32 = arith.constant 16 : i32
      %13 = arith.muli %c0_i32_5, %c16_i32 : i32
      %14 = tpu.assume_multiple %13, 16 : i32
      %15 = arith.index_cast %14 : i32 to index
      %c0_6 = arith.constant 0 : index
      %16 = vector.load %arg2[%15, %c0_6] : memref<16x128xf32, #tpu.memory_space<vmem>>, vector<16x128xf32>
      %17 = arith.index_cast %14 : i32 to index
      %c0_7 = arith.constant 0 : index
      %18 = vector.load %arg3[%17, %c0_7] : memref<16x128xf32, #tpu.memory_space<vmem>>, vector<16x128xf32>
      %19 = arith.subf %16, %18 : vector<16x128xf32>
      %20 = arith.mulf %19, %19 : vector<16x128xf32>
      %c16_i32_8 = arith.constant 16 : i32
      %21 = arith.muli %4, %c16_i32_8 : i32
      %22 = arith.addi %21, %14 : i32
      %23 = tpu.iota {dimensions = array<i32: 0>} : vector<16x128xi32>
      %24 = vector.broadcast %22 : i32 to vector<16x128xi32>
      %25 = arith.addi %24, %23 : vector<16x128xi32>
      %c50_i32 = arith.constant 50 : i32
      %26 = vector.broadcast %c50_i32 : i32 to vector<16x128xi32>
      %27 = arith.cmpi slt, %25, %26 : vector<16x128xi32>
      %cst_9 = arith.constant 0.000000e+00 : f32
      %28 = vector.broadcast %cst_9 : f32 to vector<16x128xf32>
      %29 = arith.select %27, %20, %28 : vector<16x128xi1>, vector<16x128xf32>
      %30 = vector.shape_cast %29 : vector<16x128xf32> to vector<2x8x128xf32>
      %cst_10 = arith.constant dense<0.000000e+00> : vector<8x128xf32>
      %31 = vector.multi_reduction <add>, %30, %cst_10 [0] : vector<2x8x128xf32> to vector<8x128xf32>
      %32 = arith.addf %12, %31 : vector<8x128xf32>
      %c1_i32 = arith.constant 1 : i32
      %33 = arith.addf %11, %32 : vector<8x128xf32>
      %c0_11 = arith.constant 0 : index
      %c0_12 = arith.constant 0 : index
      %34 = vector.load %arg4[%c0_11, %c0_12] : memref<8x128xf32, #tpu.memory_space<vmem>>, vector<8x128xf32>
      tpu.vector_store %arg4[%c0_11, %c0_12], %33 {strides = array<i32>} : memref<8x128xf32, #tpu.memory_space<vmem>>, vector<8x128xf32>,
    } else {
    }
    return
  }
  func.func @transform_0(%arg0: i32, %arg1: i32) -> (i32, i32) {
    %c2_i32 = arith.constant 2 : i32
    %0 = arith.muli %arg0, %c2_i32 : i32
    %1 = arith.addi %0, %arg1 : i32
    %c3_i32 = arith.constant 3 : i32
    %2 = arith.minsi %1, %c3_i32 : i32
    %c0_i32 = arith.constant 0 : i32
    %c0_i32_0 = arith.constant 0 : i32
    return %2, %c0_i32 : i32, i32
  }
  func.func @transform_1(%arg0: i32, %arg1: i32) -> (i32, i32) {
    %c2_i32 = arith.constant 2 : i32
    %0 = arith.muli %arg0, %c2_i32 : i32
    %1 = arith.addi %0, %arg1 : i32
    %c3_i32 = arith.constant 3 : i32
    %2 = arith.minsi %1, %c3_i32 : i32
    %c0_i32 = arith.constant 0 : i32
    %c0_i32_0 = arith.constant 0 : i32
    return %2, %c0_i32 : i32, i32
  }
  func.func @transform_2(%arg0: i32, %arg1: i32) -> (i32, i32) {
    %c0_i32 = arith.constant 0 : i32
    %c0_i32_0 = arith.constant 0 : i32
    return %arg0, %c0_i32 : i32, i32
  }
}

</mosaic_0001>

<llo_original>
// kernel: tpu_custom_call.1
$region0: #{tpu_custom_call.1}
  #allocation0 [shape = 'u32[]', space=smem, size = 0x4, offset = 0x4, fixed_abs, tag = 'smem constant byte address 0x4 - core index']
  #allocation1 [shape = 'u32[144,128]{1,0:T(1,128)}', space=vmem, size = 0x12000, scoped, tag = 'internal scratch']
  %s0 = inlined_call_operand.hbm [shape: f32[50,128], index: 0, kind: input, shape index: {}]
  %s1 = inlined_call_operand.hbm [shape: f32[50,128], index: 1, kind: input, shape index: {}]
  %s2 = inlined_call_operand.hbm [shape: f32[16,128], index: 2, kind: output, shape index: {}]
  %s3 = sld [smem:[#allocation0]]
  $region61: #{tpu_custom_call.1} parent=0
    _
  %s5 = ssub.s32 1, %s3
  %s6 = scalar_select 0, %s5, %s3
  $region1: #{tpu_custom_call.1} parent=0
    #allocation2 [shape = 'u8[16384]{0}', space=vmem, size = 0x4000, scoped, tag = 'input window, operand 0']
    #allocation3 [shape = 's32[2]{0}', space=sflag, size = 0x8, scoped, tag = 'scoped memory for tpu_custom_call.1']
    #allocation4 [shape = 's32[2]{0}', space=sflag, size = 0x8, scoped, tag = 'scoped memory for tpu_custom_call.1']
    #allocation5 [shape = 'u8[16384]{0}', space=vmem, size = 0x4000, scoped, tag = 'input window, operand 1']
    #allocation6 [shape = 's32[2]{0}', space=sflag, size = 0x8, scoped, tag = 'scoped memory for tpu_custom_call.1']
    #allocation7 [shape = 'u8[8192]{0}', space=vmem, size = 0x2000, scoped, tag = 'output window, operand 0']
    %7 = vsyncpa [#allocation3], 0
    %s8 = scalar_lea.sflag [#allocation3], 1
    %9 = vsyncpa %s8, 0
    %10 = vsyncpa [#allocation6], 0
    %s11 = scalar_lea.sflag [#allocation6], 1
    %12 = vsyncpa %s11, 0
    %13 = vsyncpa [#allocation4], 0
    %s14 = scalar_lea.sflag [#allocation4], 1
    %15 = vsyncpa %s14, 0
    loop: start=0, step=1, limit=6
    $region2: #{tpu_custom_call.1} parent=1 // loop_pre_header
      _
    $region3: #{tpu_custom_call.1} parent=1 // loop_header
      %s17 = sphi 0, %s21
      %p18 = scmp.ge.s32.totalorder %s17, 6
      %s24 = sphi 0, %s36
      %s25 = sphi 0, %s32
      %s26 = sphi 0, %s24
      %s27 = sphi 0, %s25
      %s28 = sphi 0, %s26
      %s29 = sphi 0, %s27
      %s47 = sphi 0, %s49
      %s50 = sphi 0, %s47
      %s51 = sphi 0, %s50
      %s67 = sphi 0, %s51
      %s81 = sphi 0, %s83
      %s84 = sphi 0, %s81
      %s85 = sphi 0, %s84
      %s101 = sphi 0, %s85
      %s107 = sphi 0, %s109
      %s110 = sphi 0, %s107
      %s111 = sphi 0, %s110
      %s127 = sphi 0, %s111
    $region4: #{tpu_custom_call.1} parent=1 // loop_header_branch
      %20 = sbr.rel (%p18) target = $region8
    $region5: #{tpu_custom_call.1} parent=1 // loop_body
      %s22 = ssub.s32 %s17, 1
      %s23 = ssub.s32 %s17, 2
      %s30 = sadd.s32 1, %s25
      %p31 = scmp.ge.s32.totalorder %s30, 2
      %s32 = scalar_select %p31, 0, %s30
      %s33 = sadd.s32 1, %s24
      %s34 = scalar_select %p31, %s33, %s24
      %p35 = scmp.ge.s32.totalorder %s34, 2
      %s36 = scalar_select %p35, 0, %s34
      %s37 = smul.u32 %s24, 2
      %s38 = sadd.s32 %s37, %s25
      %p39 = scmp.lt.s32.totalorder %s38, 3
      %s40 = scalar_select %p39, %s38, 3
      %s41 = smul.u32 %s36, 2
      %s42 = sadd.s32 %s41, %s32
      %p43 = scmp.lt.s32.totalorder %s42, 3
      %s44 = scalar_select %p43, %s42, 3
      %s45 = ssub.s32 %s40, %s44
      %p46 = scmp.eq.s32.totalorder %s45, 0
      %s48 = sadd.s32 %s47, 1
      %s49 = scalar_select %p46, %s47, %s48
      %p52 = pneg %p46
      %p53 = scmp.eq.s32.totalorder %s17, 3
      %p54 = por %p52, %p53
      %p55 = scmp.ne.s32.totalorder %s47, %s50
      %p56 = scmp.eq.s32.totalorder %s17, 0
      %p57 = por %p55, %p56
      %p58 = scmp.ne.s32.totalorder %s47, %s50
      %p59 = scmp.eq.s32.totalorder %s22, 3
      %p60 = por %p58, %p59
      %p61 = scmp.ne.s32.totalorder %s50, %s51
      %p62 = scmp.eq.s32.totalorder %s22, 0
      %p63 = por %p61, %p62
      %p64 = scmp.ne.s32.totalorder %s50, %s51
      %p65 = scmp.eq.s32.totalorder %s23, 3
      %p66 = por %p64, %p65
      %p68 = scmp.ne.s32.totalorder %s51, %s67
      %p69 = scmp.eq.s32.totalorder %s23, 0
      %p70 = por %p68, %p69
      %s71 = smul.u32 %s24, 2
      %s72 = sadd.s32 %s71, %s25
      %p73 = scmp.lt.s32.totalorder %s72, 3
      %s74 = scalar_select %p73, %s72, 3
      %s75 = smul.u32 %s36, 2
      %s76 = sadd.s32 %s75, %s32
      %p77 = scmp.lt.s32.totalorder %s76, 3
      %s78 = scalar_select %p77, %s76, 3
      %s79 = ssub.s32 %s74, %s78
      %p80 = scmp.eq.s32.totalorder %s79, 0
      %s82 = sadd.s32 %s81, 1
      %s83 = scalar_select %p80, %s81, %s82
      %p86 = pneg %p80
      %p87 = scmp.eq.s32.totalorder %s17, 3
      %p88 = por %p86, %p87
      %p89 = scmp.ne.s32.totalorder %s81, %s84
      %p90 = scmp.eq.s32.totalorder %s17, 0
      %p91 = por %p89, %p90
      %p92 = scmp.ne.s32.totalorder %s81, %s84
      %p93 = scmp.eq.s32.totalorder %s22, 3
      %p94 = por %p92, %p93
      %p95 = scmp.ne.s32.totalorder %s84, %s85
      %p96 = scmp.eq.s32.totalorder %s22, 0
      %p97 = por %p95, %p96
      %p98 = scmp.ne.s32.totalorder %s84, %s85
      %p99 = scmp.eq.s32.totalorder %s23, 3
      %p100 = por %p98, %p99
      %p102 = scmp.ne.s32.totalorder %s85, %s101
      %p103 = scmp.eq.s32.totalorder %s23, 0
      %p104 = por %p102, %p103
      %s105 = ssub.s32 %s24, %s36
      %p106 = scmp.eq.s32.totalorder %s105, 0
      %s108 = sadd.s32 %s107, 1
      %s109 = scalar_select %p106, %s107, %s108
      %p112 = pneg %p106
      %p113 = scmp.eq.s32.totalorder %s17, 3
      %p114 = por %p112, %p113
      %p115 = scmp.ne.s32.totalorder %s107, %s110
      %p116 = scmp.eq.s32.totalorder %s17, 0
      %p117 = por %p115, %p116
      %p118 = scmp.ne.s32.totalorder %s107, %s110
      %p119 = scmp.eq.s32.totalorder %s22, 3
      %p120 = por %p118, %p119
      %p121 = scmp.ne.s32.totalorder %s110, %s111
      %p122 = scmp.eq.s32.totalorder %s22, 0
      %p123 = por %p121, %p122
      %p124 = scmp.ne.s32.totalorder %s110, %s111
      %p125 = scmp.eq.s32.totalorder %s23, 3
      %p126 = por %p124, %p125
      %p128 = scmp.ne.s32.totalorder %s111, %s127
      %p129 = scmp.eq.s32.totalorder %s23, 0
      %p130 = por %p128, %p129
      %p131 = scmp.le.s32.totalorder 1, %s17
      %p132 = scmp.lt.s32.totalorder %s17, 5
      %p133 = pnand %p131, %p132
      %p134 = pneg %p133
      // Predicated region
      $region9: #{tpu_custom_call.1} parent=5 // pred_check
        _
      $region10: #{tpu_custom_call.1} parent=5 // pred_check_branch
        %136 = sbr.rel (%p133) target = $region12
      $region11: #{tpu_custom_call.1} parent=5 // pred_region
        %s137 = ssub.s32 %s17, 1
      $region12: #{tpu_custom_call.1} parent=5 // pred_fallthru
        _
      %p138 = scmp.lt.s32.totalorder %s17, 4
      // Predicated region
      $region13: #{tpu_custom_call.1} parent=5 // pred_check
        %p139 = pneg %p138
      $region14: #{tpu_custom_call.1} parent=5 // pred_check_branch
        %141 = sbr.rel (%p139) target = $region16
      $region15: #{tpu_custom_call.1} parent=5 // pred_region
        // Predicated region
        $region17: #{tpu_custom_call.1} parent=15 // pred_check
          %p142 = pneg %p57
        $region18: #{tpu_custom_call.1} parent=15 // pred_check_branch
          %144 = sbr.rel (%p142) target = $region20
        $region19: #{tpu_custom_call.1} parent=15 // pred_region
          %s145 = sand.u32 %s47, 1
          %s146 = scalar_lea.sflag [#allocation3], %s145
          %s147 = sand.u32 %s47, 1
          %s148 = smul.addr %s147, 16
          %s149 = scalar_lea.vmem [#allocation2], %s148
          %s150 = smul.u32 %s24, 2
          %s151 = sadd.s32 %s150, %s25
          %p152 = scmp.lt.s32.totalorder %s151, 3
          %s153 = scalar_select %p152, %s151, 3
          %s154 = smul.u32 2, %s153
          %s155 = ssub.s32 7, %s154
          %p156 = scmp.lt.s32.totalorder %s155, 2
          %s157 = scalar_select %p156, %s155, 2
          %s158 = smul.u32 128, %s157
          %s160 = ssub.s32 256, %s158
          %161 = vsyncadd %s146, %s160
          %p162 = scmp.ne.s32.totalorder 0, %s158
          %s163 = smul.addr %s154, 128
          %s164 = scalar_lea.hbm %s0, %s163
          %s165 = smul.u32 8, %s157
          %s166 = sshll.u32 %s149, 4
          %s167 = int_to_ptr.vmem [resolvable:$true] %s166
          %s168 = sshll.u32 %s165, 4
          %172 = dma.hbm_to_vmem [thread:$0]  (%p162), %s164, %s168, %s167, %s146, 128, 128, 8
        $region20: #{tpu_custom_call.1} parent=15 // pred_fallthru
          _
        // Predicated region
        $region21: #{tpu_custom_call.1} parent=15 // pred_check
          %p173 = pneg %p91
        $region22: #{tpu_custom_call.1} parent=15 // pred_check_branch
          %175 = sbr.rel (%p173) target = $region24
        $region23: #{tpu_custom_call.1} parent=15 // pred_region
          %s176 = sand.u32 %s81, 1
          %s177 = scalar_lea.sflag [#allocation6], %s176
          %s178 = sand.u32 %s81, 1
          %s179 = smul.addr %s178, 16
          %s180 = scalar_lea.vmem [#allocation5], %s179
          %s181 = smul.u32 %s24, 2
          %s182 = sadd.s32 %s181, %s25
          %p183 = scmp.lt.s32.totalorder %s182, 3
          %s184 = scalar_select %p183, %s182, 3
          %s185 = smul.u32 2, %s184
          %s186 = ssub.s32 7, %s185
          %p187 = scmp.lt.s32.totalorder %s186, 2
          %s188 = scalar_select %p187, %s186, 2
          %s189 = smul.u32 128, %s188
          %s191 = ssub.s32 256, %s189
          %192 = vsyncadd %s177, %s191
          %p193 = scmp.ne.s32.totalorder 0, %s189
          %s194 = smul.addr %s185, 128
          %s195 = scalar_lea.hbm %s1, %s194
          %s196 = smul.u32 8, %s188
          %s197 = sshll.u32 %s180, 4
          %s198 = int_to_ptr.vmem [resolvable:$true] %s197
          %s199 = sshll.u32 %s196, 4
          %203 = dma.hbm_to_vmem [thread:$0]  (%p193), %s195, %s199, %s198, %s177, 128, 128, 8
        $region24: #{tpu_custom_call.1} parent=15 // pred_fallthru
          _
      $region16: #{tpu_custom_call.1} parent=5 // pred_fallthru
        _
      %p204 = scmp.le.s32.totalorder 1, %s17
      %p205 = scmp.lt.s32.totalorder %s17, 5
      %p206 = pnand %p204, %p205
      %p207 = pneg %p206
      // Predicated region
      $region25: #{tpu_custom_call.1} parent=5 // pred_check
        _
      $region26: #{tpu_custom_call.1} parent=5 // pred_check_branch
        %209 = sbr.rel (%p206) target = $region28
      $region27: #{tpu_custom_call.1} parent=5 // pred_region
        %s210 = ssub.s32 %s17, 1
        %s211 = sand.u32 %s50, 1
        %s212 = scalar_lea.sflag [#allocation3], %s211
        %s213 = sand.u32 %s50, 1
        %s214 = smul.addr %s213, 16
        %s215 = scalar_lea.vmem [#allocation2], %s214
        // Predicated region
        $region29: #{tpu_custom_call.1} parent=27 // pred_check
          %p216 = pneg %p63
        $region30: #{tpu_custom_call.1} parent=27 // pred_check_branch
          %218 = sbr.rel (%p216) target = $region32
        $region31: #{tpu_custom_call.1} parent=27 // pred_region
          %219 = dma.done %s212, 256
        $region32: #{tpu_custom_call.1} parent=27 // pred_fallthru
          _
        %s220 = sand.u32 %s84, 1
        %s221 = scalar_lea.sflag [#allocation6], %s220
        %s222 = sand.u32 %s84, 1
        %s223 = smul.addr %s222, 16
        %s224 = scalar_lea.vmem [#allocation5], %s223
        // Predicated region
        $region33: #{tpu_custom_call.1} parent=27 // pred_check
          %p225 = pneg %p97
        $region34: #{tpu_custom_call.1} parent=27 // pred_check_branch
          %227 = sbr.rel (%p225) target = $region36
        $region35: #{tpu_custom_call.1} parent=27 // pred_region
          %228 = dma.done %s221, 256
        $region36: #{tpu_custom_call.1} parent=27 // pred_fallthru
          _
        %s229 = sand.u32 %s50, 1
        %s230 = scalar_lea.sflag [#allocation3], %s229
        %s231 = sand.u32 %s50, 1
        %s232 = smul.addr %s231, 16
        %s233 = scalar_lea.vmem [#allocation2], %s232
        %p234 = pneg %p63
        %p235 = pneg %p60
        %s236 = sand.u32 %s84, 1
        %s237 = scalar_lea.sflag [#allocation6], %s236
        %s238 = sand.u32 %s84, 1
        %s239 = smul.addr %s238, 16
        %s240 = scalar_lea.vmem [#allocation5], %s239
        %p241 = pneg %p97
        %p242 = pneg %p94
        %p243 = pneg %p123
        %p244 = pneg %p120
        %s245 = sand.u32 %s110, 1
        %s246 = scalar_lea.sflag [#allocation4], %s245
        %s247 = sand.u32 %s110, 1
        %s248 = smul.addr %s247, 8
        %s249 = scalar_lea.vmem [#allocation7], %s248
        %s250 = smul.u32 %s26, 2
        %s251 = sadd.s32 %s250, %s27
        %p252 = scmp.lt.s32.totalorder %s251, 3
        %s253 = scalar_select %p252, %s251, 3
        %s254 = smul.u32 2, %s253
        %s255 = ssub.s32 7, %s254
        %p256 = scmp.lt.s32.totalorder %s255, 2
        %s257 = scalar_select %p256, %s255, 2
        %s258 = smul.u32 128, %s257
        %s259 = smul.u32 %s26, 2
        %s260 = sadd.s32 %s259, %s27
        %p261 = scmp.lt.s32.totalorder %s260, 3
        %s262 = scalar_select %p261, %s260, 3
        %s263 = smul.u32 2, %s262
        %s264 = ssub.s32 7, %s263
        %p265 = scmp.lt.s32.totalorder %s264, 2
        %s266 = scalar_select %p265, %s264, 2
        %s267 = smul.u32 128, %s266
        %p268 = scmp.eq.s32.totalorder %s27, 0
        // Predicated region
        $region37: #{tpu_custom_call.1} parent=27 // pred_check
          %p269 = pneg %p268
        $region38: #{tpu_custom_call.1} parent=27 // pred_check_branch
          %271 = sbr.rel (%p269) target = $region40
        $region39: #{tpu_custom_call.1} parent=27 // pred_region
          %272 = vst [vmem:[%s249] sm:$0xff] 0.0
        $region40: #{tpu_custom_call.1} parent=27 // pred_fallthru
          _
        %s273 = smul.u32 %s26, 2
        %s274 = sadd.s32 %s273, %s27
        %p275 = scmp.lt.s32.totalorder %s274, 3
        // Predicated region
        $region41: #{tpu_custom_call.1} parent=27 // pred_check
          %p276 = pneg %p275
        $region42: #{tpu_custom_call.1} parent=27 // pred_check_branch
          %278 = sbr.rel (%p276) target = $region44
        $region43: #{tpu_custom_call.1} parent=27 // pred_region
          %v279 = vld [vmem:[%s249] sm:$0xff]
          %v280 = vld [vmem:[%s215] sm:$0xff]
          %v281 = vld [vmem:[%s215 + $0x8] sm:$0xff]
          %v282 = vld [vmem:[%s224] sm:$0xff]
          %v283 = vld [vmem:[%s224 + $0x8] sm:$0xff]
          %v284 = vsub.f32 %v280, %v282
          %v285 = vsub.f32 %v281, %v283
          %v286 = vmul.f32 %v284, %v284
          %v287 = vmul.f32 %v285, %v285
          %v288 = vadd.f32 %v286, %v287
          %v289 = vadd.f32 %v288, 0.0
          %v290 = vadd.f32 %v279, %v289
          %291 = vst [vmem:[%s249] sm:$0xff] %v290
        $region44: #{tpu_custom_call.1} parent=27 // pred_fallthru
          _
        %p292 = scmp.ge.s32.totalorder %s274, 3
        // Predicated region
        $region45: #{tpu_custom_call.1} parent=27 // pred_check
          %p293 = pneg %p292
        $region46: #{tpu_custom_call.1} parent=27 // pred_check_branch
          %295 = sbr.rel (%p293) target = $region48
        $region47: #{tpu_custom_call.1} parent=27 // pred_region
          %v296 = vld [vmem:[%s249] sm:$0xff]
          %v297 = vld [vmem:[%s215] sm:$0xff]
          %v298 = vld [vmem:[%s215 + $0x8] sm:$0xff]
          %v299 = vld [vmem:[%s224] sm:$0xff]
          %v300 = vld [vmem:[%s224 + $0x8] sm:$0xff]
          %v301 = vsub.f32 %v297, %v299
          %v302 = vsub.f32 %v298, %v300
          %v303 = vmul.f32 %v301, %v301
          %v304 = vmul.f32 %v302, %v302
          %s305 = smul.u32 %s274, 16
          %s306 = sadd.s32 %s305, 0
          %v307 = vlaneseq
          %v308 = vshrl.u32 %v307, 7
          %v309 = vadd.s32 %v308, 8
          %v310 = vstv %s306
          %v311 = vadd.s32 %v310, %v308
          %v312 = vadd.s32 %v310, %v309
          %vm313 = vcmp.lt.s32.totalorder %v311, 50
          %vm314 = vcmp.lt.s32.totalorder %v312, 50
          %v315 = vsel %vm313, %v303, 0.0
          %v316 = vsel %vm314, %v304, 0.0
          %v317 = vadd.f32 %v315, %v316
          %v318 = vadd.f32 %v317, 0.0
          %v319 = vadd.f32 %v296, %v318
          %320 = vst [vmem:[%s249] sm:$0xff] %v319
        $region48: #{tpu_custom_call.1} parent=27 // pred_fallthru
          _
        %s321 = sand.u32 %s110, 1
        %s322 = scalar_lea.sflag [#allocation4], %s321
        %s323 = sand.u32 %s110, 1
        %s324 = smul.addr %s323, 8
        %s325 = scalar_lea.vmem [#allocation7], %s324
        // Predicated region
        $region49: #{tpu_custom_call.1} parent=27 // pred_check
          %p326 = pneg %p120
        $region50: #{tpu_custom_call.1} parent=27 // pred_check_branch
          %328 = sbr.rel (%p326) target = $region52
        $region51: #{tpu_custom_call.1} parent=27 // pred_region
          %s330 = ssub.s32 128, 128
          %331 = vsyncadd %s322, %s330
          %s332 = smul.addr %s26, 128
          %s333 = scalar_lea.hbm %s2, %s332
          %s335 = sshll.u32 %s325, 4
          %s336 = int_to_ptr.vmem [resolvable:$true] %s335
          %338 = dma.vmem_to_hbm [thread:$0]  %s336, 128, %s333, %s322
        $region52: #{tpu_custom_call.1} parent=27 // pred_fallthru
          _
      $region28: #{tpu_custom_call.1} parent=5 // pred_fallthru
        _
      %p339 = scmp.le.s32.totalorder 2, %s17
      // Predicated region
      $region53: #{tpu_custom_call.1} parent=5 // pred_check
        %p340 = pneg %p339
      $region54: #{tpu_custom_call.1} parent=5 // pred_check_branch
        %342 = sbr.rel (%p340) target = $region56
      $region55: #{tpu_custom_call.1} parent=5 // pred_region
        %s343 = ssub.s32 %s17, 2
        // Predicated region
        $region57: #{tpu_custom_call.1} parent=55 // pred_check
          %p344 = pneg %p126
        $region58: #{tpu_custom_call.1} parent=55 // pred_check_branch
          %346 = sbr.rel (%p344) target = $region60
        $region59: #{tpu_custom_call.1} parent=55 // pred_region
          %s347 = sand.u32 %s111, 1
          %s348 = scalar_lea.sflag [#allocation4], %s347
          %s349 = sand.u32 %s111, 1
          %s350 = smul.addr %s349, 8
          %s351 = scalar_lea.vmem [#allocation7], %s350
          %352 = dma.done %s348, 128
        $region60: #{tpu_custom_call.1} parent=55 // pred_fallthru
          _
      $region56: #{tpu_custom_call.1} parent=5 // pred_fallthru
        _
    $region6: #{tpu_custom_call.1} parent=1 // loop_footer
      %s21 = sadd.s32 1, %s17
    $region7: #{tpu_custom_call.1} parent=1 // loop_footer_branch
      %16 = sbr.rel target = $region3
    $region8: #{tpu_custom_call.1} parent=1 // loop_exit
      _
    %353 = vsyncpa [#allocation3], 1
    %s354 = scalar_lea.sflag [#allocation3], 1
    %355 = vsyncpa %s354, 1
    %356 = vsyncpa [#allocation6], 1
    %s357 = scalar_lea.sflag [#allocation6], 1
    %358 = vsyncpa %s357, 1
    %359 = vsyncpa [#allocation4], 1
    %s360 = scalar_lea.sflag [#allocation4], 1
    %361 = vsyncpa %s360, 1

</llo_original>
